<compile_context>
chip_gen: v6e
topology: v6e:2x2x1
jax: 0.10.0
libtpu: 0.0.40
codegen_flags: <defaults>
</compile_context>

<pallas_src>
import functools

import jax
import jax.numpy as jnp
from jax.experimental import pallas as pl
from jax.experimental.pallas import tpu as pltpu


def _fm_kernel(lr_ref, emb_ref, out_ref, *, num_fields_p1, dim):
    """One batch tile of the FM forward pass (natural layout, batch on sublanes).

    lr_ref  : VMEM (tb, 1)        pre-summed LR weights + bias for this tile
    emb_ref : VMEM (tb, F1*D)     feature embeddings, natural row-major layout
    out_ref : VMEM (tb, 1)        FM output for this tile
    """
    fd = num_fields_p1 * dim
    e = emb_ref[...].astype(jnp.float32)                       # (tb, F1*D)

    # Constant (F1*D, D) 0/1 selector: column d picks dim d of every field.
    r = jax.lax.broadcasted_iota(jnp.int32, (fd, dim), 0)
    c = jax.lax.broadcasted_iota(jnp.int32, (fd, dim), 1)
    sel = (r % dim == c).astype(jnp.float32)                   # (F1*D, D)
    ones_d = jnp.ones((dim, 1), jnp.float32)                   # (D, 1)

    # Per-row, per-dim field sums and field sums-of-squares via the MXU
    # (cross-lane reductions on the VPU/XLU would dominate; MXU slot is idle).
    s = jnp.dot(e, sel, preferred_element_type=jnp.float32)        # (tb, D)
    q = jnp.dot(e * e, sel, preferred_element_type=jnp.float32)    # (tb, D)

    # 0.5 * sum_d (s_d^2 - q_d); scale applied after the D-reduce.
    dot_sum = 0.5 * jnp.dot(s * s - q, ones_d,
                            preferred_element_type=jnp.float32)    # (tb, 1)
    out_ref[...] = dot_sum + lr_ref[...]


def fm_pallas(lr, emb2d, *, num_fields_p1, dim, tb):
    """lr (B, 1) f32 (bias folded in), emb2d (B, F1*D) natural layout."""
    B, fd = emb2d.shape
    assert fd == num_fields_p1 * dim
    grid = (pl.cdiv(B, tb),)
    kernel = functools.partial(_fm_kernel, num_fields_p1=num_fields_p1, dim=dim)
    return pl.pallas_call(
        kernel,
        out_shape=jax.ShapeDtypeStruct((B, 1), jnp.float32),
        grid_spec=pltpu.PrefetchScalarGridSpec(
            num_scalar_prefetch=0,
            grid=grid,
            in_specs=[
                pl.BlockSpec((tb, 1), lambda i: (i, 0)),    # lr (+bias)
                pl.BlockSpec((tb, fd), lambda i: (i, 0)),   # emb, contiguous
            ],
            out_specs=pl.BlockSpec((tb, 1), lambda i: (i, 0)),
        ),
        compiler_params=pltpu.CompilerParams(
            dimension_semantics=("parallel",),
            # Headroom for double-buffered blocks + in-kernel temporaries at
            # tb=4096 (well under physical VMEM on v5e/v6e/v7x).
            vmem_limit_bytes=48 * 1024 * 1024,
        ),
    )(lr, emb2d)


def fm_forward(X, feature_emb, lr_tables, bias, *, tb=None):
    """Full forward: LR gather+sum (+bias) in XLA glue, Pallas FM kernel."""
    B, F = X.shape
    _, F1, D = feature_emb.shape

    # LR path: gather lr_tables[f, X[b, f]], sum over fields, fold in bias.
    # Tiny (B*F elems), fuses in XLA; kernel gets a single (B, 1) vector.
    lr_w = jnp.take_along_axis(lr_tables, X.T, axis=1)                    # (F, B)
    lr = (jnp.sum(lr_w, axis=0) + bias[0]).astype(jnp.float32)[:, None]   # (B, 1)

    # Natural layout: contiguous reshape — no transpose, no pad, no copy.
    emb2d = feature_emb.reshape(B, F1 * D)                                # (B, F1*D)

    if tb is None:
        # Batch tile: large enough that per-step DMA (~320*tb bytes) dwarfs the
        # ~0.35 us step overhead; multiple of 8 (sublanes) unless B < 8.
        # TODO(synk): on v7x consider tb=8192 and an even grid-step count so
        # both TensorCores get balanced work.
        tb = B if B <= 8 else min(4096, (B // 8) * 8)

    return fm_pallas(lr, emb2d, num_fields_p1=F1, dim=D, tb=tb)           # (B, 1)


if __name__ == "__main__":
    key = jax.random.PRNGKey(0)
    B = 8           # batch
    F = 4           # num_fields
    D = 16          # embedding dim of feature_emb
    VOCAB = 10      # vocab size per field (LR embedding tables, dim=1)

    k1, k2, k3, _ = jax.random.split(key, 4)

    # Inputs
    X = jax.random.randint(k1, (B, F), 0, VOCAB, dtype=jnp.int32)          # (B, F)
    feature_emb = jax.random.normal(k2, (B, F + 1, D), dtype=jnp.float32)  # (B, F+1, D)

    # Parameters (deterministic synthetic init)
    lr_tables = 0.01 * jax.random.normal(k3, (F, VOCAB), dtype=jnp.float32)  # per-field dim-1 tables
    bias = jnp.zeros((1,), dtype=jnp.float32)                                # LR bias

    out = jax.block_until_ready(fm_forward(X, feature_emb, lr_tables, bias))

    # Pure-JAX reference (same math as the PyTorch module).
    lr_w_ref = jax.vmap(lambda tbl, idx: tbl[idx], in_axes=(0, 1), out_axes=1)(lr_tables, X)
    lr_ref = jnp.sum(lr_w_ref, axis=1, keepdims=True) + bias[0]
    sum_e = jnp.sum(feature_emb, axis=1)
    sum_sq = jnp.sum(feature_emb ** 2, axis=1)
    dot_ref = 0.5 * jnp.sum(sum_e ** 2 - sum_sq, axis=1, keepdims=True)
    ref = dot_ref + lr_ref

    assert out.shape == (B, 1)
    assert jnp.allclose(out, ref, atol=1e-4, rtol=1e-4), (out, ref)

    print("KERNEL_OK")
</pallas_src>

<mosaic_0001>
module attributes {stable_mosaic.version = 11 : i64} {
  func.func @_fm_kernel(%arg0: i32, %arg1: memref<8x1xf32, #tpu.memory_space<vmem>>, %arg2: memref<8x80xf32, #tpu.memory_space<vmem>>, %arg3: memref<8x1xf32, #tpu.memory_space<vmem>>) attributes {dimension_semantics = [#tpu.dimension_semantics<parallel>], iteration_bounds = array<i64: 1>, scalar_prefetch = 0 : i64, scratch_operands = 0 : i64, tpu.core_type = #tpu.core_type<tc>, window_params = [{transform_indices = @transform_0, window_bounds = array<i64: 8, 1>}, {transform_indices = @transform_1, window_bounds = array<i64: 8, 80>}, {transform_indices = @transform_2, window_bounds = array<i64: 8, 1>}]} {
    %c0 = arith.constant 0 : index
    %c0_0 = arith.constant 0 : index
    %0 = vector.load %arg2[%c0, %c0_0] : memref<8x80xf32, #tpu.memory_space<vmem>>, vector<8x80xf32>
    %1 = tpu.iota {dimensions = array<i32: 0>} : vector<80x16xi32>
    %2 = tpu.iota {dimensions = array<i32: 1>} : vector<80x16xi32>
    %c16_i32 = arith.constant 16 : i32
    %c0_i32 = arith.constant 0 : i32
    %3 = arith.cmpi eq, %c16_i32, %c0_i32 : i32
    %c1_i32 = arith.constant 1 : i32
    %4 = arith.select %3, %c1_i32, %c16_i32 : i32
    %5 = vector.broadcast %4 : i32 to vector<80x16xi32>
    %6 = arith.remsi %1, %5 : vector<80x16xi32>
    %c0_i32_1 = arith.constant 0 : i32
    %7 = vector.broadcast %c0_i32_1 : i32 to vector<80x16xi32>
    %8 = arith.cmpi ne, %6, %7 : vector<80x16xi32>
    %c0_i32_2 = arith.constant 0 : i32
    %9 = vector.broadcast %c0_i32_2 : i32 to vector<80x16xi32>
    %10 = arith.cmpi slt, %6, %9 : vector<80x16xi32>
    %c0_i32_3 = arith.constant 0 : i32
    %11 = arith.cmpi slt, %4, %c0_i32_3 : i32
    %12 = vector.broadcast %11 : i1 to vector<80x16xi1>
    %13 = vector.broadcast %12 : vector<80x16xi1> to vector<80x16xi1>
    %14 = arith.xori %10, %13 : vector<80x16xi1>
    %15 = arith.andi %14, %8 : vector<80x16xi1>
    %16 = vector.broadcast %4 : i32 to vector<80x16xi32>
    %17 = arith.addi %6, %16 : vector<80x16xi32>
    %18 = arith.select %15, %17, %6 : vector<80x16xi1>, vector<80x16xi32>
    %19 = arith.cmpi eq, %18, %2 : vector<80x16xi32>
    %20 = arith.extui %19 : vector<80x16xi1> to vector<80x16xi32>
    %21 = arith.sitofp %20 : vector<80x16xi32> to vector<80x16xf32>
    %cst = arith.constant 1.000000e+00 : f32
    %22 = vector.broadcast %cst : f32 to vector<16x1xf32>
    %cst_4 = arith.constant dense<0.000000e+00> : vector<8x16xf32>
    %23 = tpu.matmul %0, %21, %cst_4 {dimension_numbers = #tpu.dot_dimension_numbers<[1], [0], [0], [1], [0, 0, 1, 1], [], []>} : vector<8x80xf32>, vector<80x16xf32>, vector<8x16xf32> -> vector<8x16xf32>
    %24 = arith.mulf %0, %0 : vector<8x80xf32>
    %cst_5 = arith.constant dense<0.000000e+00> : vector<8x16xf32>
    %25 = tpu.matmul %24, %21, %cst_5 {dimension_numbers = #tpu.dot_dimension_numbers<[1], [0], [0], [1], [0, 0, 1, 1], [], []>} : vector<8x80xf32>, vector<80x16xf32>, vector<8x16xf32> -> vector<8x16xf32>
    %26 = arith.mulf %23, %23 : vector<8x16xf32>
    %27 = arith.subf %26, %25 : vector<8x16xf32>
    %cst_6 = arith.constant dense<0.000000e+00> : vector<8x1xf32>
    %28 = tpu.matmul %27, %22, %cst_6 {dimension_numbers = #tpu.dot_dimension_numbers<[1], [0], [0], [1], [0, 0, 1, 1], [], []>} : vector<8x16xf32>, vector<16x1xf32>, vector<8x1xf32> -> vector<8x1xf32>
    %cst_7 = arith.constant 5.000000e-01 : f32
    %29 = vector.broadcast %cst_7 : f32 to vector<8x1xf32>
    %30 = arith.mulf %29, %28 : vector<8x1xf32>
    %c0_8 = arith.constant 0 : index
    %c0_9 = arith.constant 0 : index
    %31 = vector.load %arg1[%c0_8, %c0_9] : memref<8x1xf32, #tpu.memory_space<vmem>>, vector<8x1xf32>
    %32 = arith.addf %30, %31 : vector<8x1xf32>
    %c0_10 = arith.constant 0 : index
    %c0_11 = arith.constant 0 : index
    %33 = vector.load %arg3[%c0_10, %c0_11] : memref<8x1xf32, #tpu.memory_space<vmem>>, vector<8x1xf32>
    tpu.vector_store %arg3[%c0_10, %c0_11], %32 {strides = array<i32>} : memref<8x1xf32, #tpu.memory_space<vmem>>, vector<8x1xf32>,
    return
  }
  func.func @transform_0(%arg0: i32) -> (i32, i32) {
    %c0_i32 = arith.constant 0 : i32
    %c0_i32_0 = arith.constant 0 : i32
    return %arg0, %c0_i32 : i32, i32
  }
  func.func @transform_1(%arg0: i32) -> (i32, i32) {
    %c0_i32 = arith.constant 0 : i32
    %c0_i32_0 = arith.constant 0 : i32
    return %arg0, %c0_i32 : i32, i32
  }
  func.func @transform_2(%arg0: i32) -> (i32, i32) {
    %c0_i32 = arith.constant 0 : i32
    %c0_i32_0 = arith.constant 0 : i32
    return %arg0, %c0_i32 : i32, i32
  }
}

</mosaic_0001>

<llo_original>
// kernel: tpu_custom_call.1
$region0: #{tpu_custom_call.1}
  #allocation0 [shape = 'u32[]', space=smem, size = 0x4, offset = 0x4, fixed_abs, tag = 'smem constant byte address 0x4 - core index']
  #allocation1 [shape = 'u32[144,128]{1,0:T(1,128)}', space=vmem, size = 0x12000, scoped, tag = 'internal scratch']
  %s0 = inlined_call_operand.vmem [shape: f32[8,1], index: 0, kind: input, shape index: {}]
  %s1 = inlined_call_operand.vmem [shape: f32[8,80], index: 1, kind: input, shape index: {}]
  %s2 = inlined_call_operand.vmem [shape: f32[8,1], index: 2, kind: output, shape index: {}]
  %s3 = sld [smem:[#allocation0]]
  $region18: #{tpu_custom_call.1} parent=0
    _
  %s5 = ssub.s32 1, %s3
  %s6 = scalar_select 0, %s5, %s3
  // Predicated region
  $region2: #{tpu_custom_call.1} parent=0 // pred_check
    _
  $region3: #{tpu_custom_call.1} parent=0 // pred_check_branch
    %8 = sbr.rel (0) target = $region5
  $region4: #{tpu_custom_call.1} parent=0 // pred_region
    _
  $region5: #{tpu_custom_call.1} parent=0 // pred_fallthru
    _
  // Predicated region
  $region6: #{tpu_custom_call.1} parent=0 // pred_check
    _
  $region7: #{tpu_custom_call.1} parent=0 // pred_check_branch
    %10 = sbr.rel (0) target = $region9
  $region8: #{tpu_custom_call.1} parent=0 // pred_region
    _
  $region9: #{tpu_custom_call.1} parent=0 // pred_fallthru
    _
  %v11 = vld [vmem:[%s1] sm:$0xff]
  %v12 = vlaneseq
  %v13 = vshrl.u32 %v12, 7
  %v14 = vadd.s32 %v13, 8
  %v15 = vadd.s32 %v13, 16
  %v16 = vadd.s32 %v13, 24
  %v17 = vadd.s32 %v13, 32
  %v18 = vadd.s32 %v13, 40
  %v19 = vadd.s32 %v13, 48
  %v20 = vadd.s32 %v13, 56
  %v21 = vadd.s32 %v13, 64
  %v22 = vadd.s32 %v13, 72
  %v23 = vlaneseq
  %v24 = vand.u32 %v23, 127
  %vm25 = vcmp.lt.s32.totalorder %v13, 0
  %v26 = vsub.s32 0, %v13
  %v27 = vsel %vm25, %v26, %v13
  %v28 = vshrl.u32 %v27, 4
  %v29 = vand.u32 %v27, 15
  %v30 = vsub.s32 0, %v29
  %v31 = vsel %vm25, %v30, %v29
  %vm32 = vcmp.lt.s32.totalorder %v14, 0
  %v33 = vsub.s32 0, %v14
  %v34 = vsel %vm32, %v33, %v14
  %v35 = vshrl.u32 %v34, 4
  %v36 = vand.u32 %v34, 15
  %v37 = vsub.s32 0, %v36
  %v38 = vsel %vm32, %v37, %v36
  %vm39 = vcmp.lt.s32.totalorder %v15, 0
  %v40 = vsub.s32 0, %v15
  %v41 = vsel %vm39, %v40, %v15
  %v42 = vshrl.u32 %v41, 4
  %v43 = vand.u32 %v41, 15
  %v44 = vsub.s32 0, %v43
  %v45 = vsel %vm39, %v44, %v43
  %vm46 = vcmp.lt.s32.totalorder %v16, 0
  %v47 = vsub.s32 0, %v16
  %v48 = vsel %vm46, %v47, %v16
  %v49 = vshrl.u32 %v48, 4
  %v50 = vand.u32 %v48, 15
  %v51 = vsub.s32 0, %v50
  %v52 = vsel %vm46, %v51, %v50
  %vm53 = vcmp.lt.s32.totalorder %v17, 0
  %v54 = vsub.s32 0, %v17
  %v55 = vsel %vm53, %v54, %v17
  %v56 = vshrl.u32 %v55, 4
  %v57 = vand.u32 %v55, 15
  %v58 = vsub.s32 0, %v57
  %v59 = vsel %vm53, %v58, %v57
  %vm60 = vcmp.lt.s32.totalorder %v18, 0
  %v61 = vsub.s32 0, %v18
  %v62 = vsel %vm60, %v61, %v18
  %v63 = vshrl.u32 %v62, 4
  %v64 = vand.u32 %v62, 15
  %v65 = vsub.s32 0, %v64
  %v66 = vsel %vm60, %v65, %v64
  %vm67 = vcmp.lt.s32.totalorder %v19, 0
  %v68 = vsub.s32 0, %v19
  %v69 = vsel %vm67, %v68, %v19
  %v70 = vshrl.u32 %v69, 4
  %v71 = vand.u32 %v69, 15
  %v72 = vsub.s32 0, %v71
  %v73 = vsel %vm67, %v72, %v71
  %vm74 = vcmp.lt.s32.totalorder %v20, 0
  %v75 = vsub.s32 0, %v20
  %v76 = vsel %vm74, %v75, %v20
  %v77 = vshrl.u32 %v76, 4
  %v78 = vand.u32 %v76, 15
  %v79 = vsub.s32 0, %v78
  %v80 = vsel %vm74, %v79, %v78
  %vm81 = vcmp.lt.s32.totalorder %v21, 0
  %v82 = vsub.s32 0, %v21
  %v83 = vsel %vm81, %v82, %v21
  %v84 = vshrl.u32 %v83, 4
  %v85 = vand.u32 %v83, 15
  %v86 = vsub.s32 0, %v85
  %v87 = vsel %vm81, %v86, %v85
  %vm88 = vcmp.lt.s32.totalorder %v22, 0
  %v89 = vsub.s32 0, %v22
  %v90 = vsel %vm88, %v89, %v22
  %v91 = vshrl.u32 %v90, 4
  %v92 = vand.u32 %v90, 15
  %v93 = vsub.s32 0, %v92
  %v94 = vsel %vm88, %v93, %v92
  %vm95 = vcmp.ne.s32.totalorder %v31, 0
  %vm96 = vcmp.ne.s32.totalorder %v38, 0
  %vm97 = vcmp.ne.s32.totalorder %v45, 0
  %vm98 = vcmp.ne.s32.totalorder %v52, 0
  %vm99 = vcmp.ne.s32.totalorder %v59, 0
  %vm100 = vcmp.ne.s32.totalorder %v66, 0
  %vm101 = vcmp.ne.s32.totalorder %v73, 0
  %vm102 = vcmp.ne.s32.totalorder %v80, 0
  %vm103 = vcmp.ne.s32.totalorder %v87, 0
  %vm104 = vcmp.ne.s32.totalorder %v94, 0
  %vm105 = vcmp.lt.s32.totalorder %v31, 0
  %vm106 = vcmp.lt.s32.totalorder %v38, 0
  %vm107 = vcmp.lt.s32.totalorder %v45, 0
  %vm108 = vcmp.lt.s32.totalorder %v52, 0
  %vm109 = vcmp.lt.s32.totalorder %v59, 0
  %vm110 = vcmp.lt.s32.totalorder %v66, 0
  %vm111 = vcmp.lt.s32.totalorder %v73, 0
  %vm112 = vcmp.lt.s32.totalorder %v80, 0
  %vm113 = vcmp.lt.s32.totalorder %v87, 0
  %vm114 = vcmp.lt.s32.totalorder %v94, 0
  %vm115 = vmand %vm105, %vm95
  %vm116 = vmand %vm106, %vm96
  %vm117 = vmand %vm107, %vm97
  %vm118 = vmand %vm108, %vm98
  %vm119 = vmand %vm109, %vm99
  %vm120 = vmand %vm110, %vm100
  %vm121 = vmand %vm111, %vm101
  %vm122 = vmand %vm112, %vm102
  %vm123 = vmand %vm113, %vm103
  %vm124 = vmand %vm114, %vm104
  %v125 = vadd.s32 %v31, 16
  %v126 = vadd.s32 %v38, 16
  %v127 = vadd.s32 %v45, 16
  %v128 = vadd.s32 %v52, 16
  %v129 = vadd.s32 %v59, 16
  %v130 = vadd.s32 %v66, 16
  %v131 = vadd.s32 %v73, 16
  %v132 = vadd.s32 %v80, 16
  %v133 = vadd.s32 %v87, 16
  %v134 = vadd.s32 %v94, 16
  %v135 = vsel %vm115, %v125, %v31
  %v136 = vsel %vm116, %v126, %v38
  %v137 = vsel %vm117, %v127, %v45
  %v138 = vsel %vm118, %v128, %v52
  %v139 = vsel %vm119, %v129, %v59
  %v140 = vsel %vm120, %v130, %v66
  %v141 = vsel %vm121, %v131, %v73
  %v142 = vsel %vm122, %v132, %v80
  %v143 = vsel %vm123, %v133, %v87
  %v144 = vsel %vm124, %v134, %v94
  %vm145 = vcmp.eq.s32.totalorder %v135, %v24
  %vm146 = vcmp.eq.s32.totalorder %v136, %v24
  %vm147 = vcmp.eq.s32.totalorder %v137, %v24
  %vm148 = vcmp.eq.s32.totalorder %v138, %v24
  %vm149 = vcmp.eq.s32.totalorder %v139, %v24
  %vm150 = vcmp.eq.s32.totalorder %v140, %v24
  %vm151 = vcmp.eq.s32.totalorder %v141, %v24
  %vm152 = vcmp.eq.s32.totalorder %v142, %v24
  %vm153 = vcmp.eq.s32.totalorder %v143, %v24
  %vm154 = vcmp.eq.s32.totalorder %v144, %v24
  %v155 = vsel %vm145, 1, 0
  %v156 = vsel %vm146, 1, 0
  %v157 = vsel %vm147, 1, 0
  %v158 = vsel %vm148, 1, 0
  %v159 = vsel %vm149, 1, 0
  %v160 = vsel %vm150, 1, 0
  %v161 = vsel %vm151, 1, 0
  %v162 = vsel %vm152, 1, 0
  %v163 = vsel %vm153, 1, 0
  %v164 = vsel %vm154, 1, 0
  %v165 = vcvt.s32.f32 %v155
  %v166 = vcvt.s32.f32 %v156
  %v167 = vcvt.s32.f32 %v157
  %v168 = vcvt.s32.f32 %v158
  %v169 = vcvt.s32.f32 %v159
  %v170 = vcvt.s32.f32 %v160
  %v171 = vcvt.s32.f32 %v161
  %v172 = vcvt.s32.f32 %v162
  %v173 = vcvt.s32.f32 %v163
  %v174 = vcvt.s32.f32 %v164
  %vm175 = vcmask 654336
  %v177 = vsel %vm175, %v11, 0
  %179 = vmatprep.subr.mxu0 0.0
  %180 = vmatpush1.msra.mxu0 0.0
  %181 = vmatprep.subr.mxu0 0.0
  %182 = vmatpush1.msra.mxu0 0.0
  %183 = vmatprep.subr.mxu0 0.0
  %184 = vmatpush1.msra.mxu0 0.0
  %185 = vmatprep.subr.mxu0 0.0
  %186 = vmatpush1.msra.mxu0 0.0
  %187 = vmatprep.subr.mxu0 0.0
  %188 = vmatpush1.msra.mxu0 0.0
  %189 = vmatprep.subr.mxu0 0.0
  %190 = vmatpush1.msra.mxu0 0.0
  %191 = vmatprep.subr.mxu0 0.0
  %192 = vmatpush1.msra.mxu0 %v174
  %193 = vmatprep.subr.mxu0 0.0
  %194 = vmatpush1.msra.mxu0 %v173
  %195 = vmatprep.subr.mxu0 0.0
  %196 = vmatpush1.msra.mxu0 %v172
  %197 = vmatprep.subr.mxu0 0.0
  %198 = vmatpush1.msra.mxu0 %v171
  %199 = vmatprep.subr.mxu0 0.0
  %200 = vmatpush1.msra.mxu0 %v170
  %201 = vmatprep.subr.mxu0 0.0
  %202 = vmatpush1.msra.mxu0 %v169
  %203 = vmatprep.subr.mxu0 0.0
  %204 = vmatpush1.msra.mxu0 %v168
  %205 = vmatprep.subr.mxu0 0.0
  %206 = vmatpush1.msra.mxu0 %v167
  %207 = vmatprep.subr.mxu0 0.0
  %208 = vmatpush1.msra.mxu0 %v166
  %209 = vmatprep.subr.mxu0 0.0
  %210 = vmatpush1.msra.mxu0 %v165
  %211 = vmatprep.subr.mxu0 0.0
  %212 = vmatpush2.msra.mxu0 0.0
  %213 = vmatprep.subr.mxu0 0.0
  %214 = vmatpush2.msra.mxu0 0.0
  %215 = vmatprep.subr.mxu0 0.0
  %216 = vmatpush2.msra.mxu0 0.0
  %217 = vmatprep.subr.mxu0 0.0
  %218 = vmatpush2.msra.mxu0 0.0
  %219 = vmatprep.subr.mxu0 0.0
  %220 = vmatpush2.msra.mxu0 0.0
  %221 = vmatprep.subr.mxu0 0.0
  %222 = vmatpush2.msra.mxu0 0.0
  %223 = vmatprep.subr.mxu0 0.0
  %224 = vmatpush2.msra.mxu0 0.0
  %225 = vmatprep.subr.mxu0 0.0
  %226 = vmatpush2.msra.mxu0 0.0
  %227 = vmatprep.subr.mxu0 0.0
  %228 = vmatpush2.msra.mxu0 0.0
  %229 = vmatprep.subr.mxu0 0.0
  %230 = vmatpush2.msra.mxu0 0.0
  %231 = vmatprep.subr.mxu0 0.0
  %232 = vmatpush2.msra.mxu0 0.0
  %233 = vmatprep.subr.mxu0 0.0
  %234 = vmatpush2.msra.mxu0 0.0
  %235 = vmatprep.subr.mxu0 0.0
  %236 = vmatpush2.msra.mxu0 0.0
  %237 = vmatprep.subr.mxu0 0.0
  %238 = vmatpush2.msra.mxu0 0.0
  %239 = vmatprep.subr.mxu0 0.0
  %240 = vmatpush2.msra.mxu0 0.0
  %241 = vmatprep.subr.mxu0 0.0
  %242 = vmatpush2.msra.mxu0 0.0
  %243 = vmatprep.mubr.f32.mxu0 0.0
  %244 = vmatmul.mubr.f32.gmra.mxu0 %v177
  %v245 = vpop.f32.mrf.mxu0
  %v246 = vadd.f32 0.0, %v245
  %v247 = vpop.f32.mrf.mxu0
  %248 = vdwg.mxu0
  %v249 = vmul.f32 %v11, %v11
  %v251 = vsel %vm175, %v249, 0
  %253 = vmatprep.subr.mxu0 0.0
  %254 = vmatpush1.msra.mxu0 0.0
  %255 = vmatprep.subr.mxu0 0.0
  %256 = vmatpush1.msra.mxu0 0.0
  %257 = vmatprep.subr.mxu0 0.0
  %258 = vmatpush1.msra.mxu0 0.0
  %259 = vmatprep.subr.mxu0 0.0
  %260 = vmatpush1.msra.mxu0 0.0
  %261 = vmatprep.subr.mxu0 0.0
  %262 = vmatpush1.msra.mxu0 0.0
  %263 = vmatprep.subr.mxu0 0.0
  %264 = vmatpush1.msra.mxu0 0.0
  %265 = vmatprep.subr.mxu0 0.0
  %266 = vmatpush1.msra.mxu0 %v174
  %267 = vmatprep.subr.mxu0 0.0
  %268 = vmatpush1.msra.mxu0 %v173
  %269 = vmatprep.subr.mxu0 0.0
  %270 = vmatpush1.msra.mxu0 %v172
  %271 = vmatprep.subr.mxu0 0.0
  %272 = vmatpush1.msra.mxu0 %v171
  %273 = vmatprep.subr.mxu0 0.0
  %274 = vmatpush1.msra.mxu0 %v170
  %275 = vmatprep.subr.mxu0 0.0
  %276 = vmatpush1.msra.mxu0 %v169
  %277 = vmatprep.subr.mxu0 0.0
  %278 = vmatpush1.msra.mxu0 %v168
  %279 = vmatprep.subr.mxu0 0.0
  %280 = vmatpush1.msra.mxu0 %v167
  %281 = vmatprep.subr.mxu0 0.0
  %282 = vmatpush1.msra.mxu0 %v166
  %283 = vmatprep.subr.mxu0 0.0
  %284 = vmatpush1.msra.mxu0 %v165
  %285 = vmatprep.subr.mxu0 0.0
  %286 = vmatpush2.msra.mxu0 0.0
  %287 = vmatprep.subr.mxu0 0.0
  %288 = vmatpush2.msra.mxu0 0.0
  %289 = vmatprep.subr.mxu0 0.0
  %290 = vmatpush2.msra.mxu0 0.0
  %291 = vmatprep.subr.mxu0 0.0
  %292 = vmatpush2.msra.mxu0 0.0
  %293 = vmatprep.subr.mxu0 0.0
  %294 = vmatpush2.msra.mxu0 0.0
  %295 = vmatprep.subr.mxu0 0.0
  %296 = vmatpush2.msra.mxu0 0.0
  %297 = vmatprep.subr.mxu0 0.0
  %298 = vmatpush2.msra.mxu0 0.0
  %299 = vmatprep.subr.mxu0 0.0
  %300 = vmatpush2.msra.mxu0 0.0
  %301 = vmatprep.subr.mxu0 0.0
  %302 = vmatpush2.msra.mxu0 0.0
  %303 = vmatprep.subr.mxu0 0.0
  %304 = vmatpush2.msra.mxu0 0.0
  %305 = vmatprep.subr.mxu0 0.0
  %306 = vmatpush2.msra.mxu0 0.0
  %307 = vmatprep.subr.mxu0 0.0
  %308 = vmatpush2.msra.mxu0 0.0
  %309 = vmatprep.subr.mxu0 0.0
  %310 = vmatpush2.msra.mxu0 0.0
  %311 = vmatprep.subr.mxu0 0.0
  %312 = vmatpush2.msra.mxu0 0.0
  %313 = vmatprep.subr.mxu0 0.0
  %314 = vmatpush2.msra.mxu0 0.0
  %315 = vmatprep.subr.mxu0 0.0
  %316 = vmatpush2.msra.mxu0 0.0
  %317 = vmatprep.mubr.f32.mxu0 0.0
  %318 = vmatmul.mubr.f32.gmra.mxu0 %v251
  %v319 = vpop.f32.mrf.mxu0
  %v320 = vadd.f32 0.0, %v319
  %v321 = vpop.f32.mrf.mxu0
  %322 = vdwg.mxu0
  %v323 = vmul.f32 %v246, %v246
  %v324 = vsub.f32 %v323, %v320
  %vm325 = vcmask 130048
  %v327 = vsel %vm325, %v324, 0
  %329 = vmatprep.subr.mxu0 0.0
  %330 = vmatpush1.msra.mxu0 0.0
  %331 = vmatprep.subr.mxu0 0.0
  %332 = vmatpush1.msra.mxu0 0.0
  %333 = vmatprep.subr.mxu0 0.0
  %334 = vmatpush1.msra.mxu0 0.0
  %335 = vmatprep.subr.mxu0 0.0
  %336 = vmatpush1.msra.mxu0 0.0
  %337 = vmatprep.subr.mxu0 0.0
  %338 = vmatpush1.msra.mxu0 0.0
  %339 = vmatprep.subr.mxu0 0.0
  %340 = vmatpush1.msra.mxu0 0.0
  %341 = vmatprep.subr.mxu0 0.0
  %342 = vmatpush1.msra.mxu0 0.0
  %343 = vmatprep.subr.mxu0 0.0
  %344 = vmatpush1.msra.mxu0 0.0
  %345 = vmatprep.subr.mxu0 0.0
  %346 = vmatpush1.msra.mxu0 0.0
  %347 = vmatprep.subr.mxu0 0.0
  %348 = vmatpush1.msra.mxu0 0.0
  %349 = vmatprep.subr.mxu0 0.0
  %350 = vmatpush1.msra.mxu0 0.0
  %351 = vmatprep.subr.mxu0 0.0
  %352 = vmatpush1.msra.mxu0 0.0
  %353 = vmatprep.subr.mxu0 0.0
  %354 = vmatpush1.msra.mxu0 0.0
  %355 = vmatprep.subr.mxu0 0.0
  %356 = vmatpush1.msra.mxu0 0.0
  %357 = vmatprep.subr.mxu0 0.0
  %358 = vmatpush1.msra.mxu0 1.0
  %359 = vmatprep.subr.mxu0 0.0
  %360 = vmatpush1.msra.mxu0 1.0
  %361 = vmatprep.subr.mxu0 0.0
  %362 = vmatpush2.msra.mxu0 0.0
  %363 = vmatprep.subr.mxu0 0.0
  %364 = vmatpush2.msra.mxu0 0.0
  %365 = vmatprep.subr.mxu0 0.0
  %366 = vmatpush2.msra.mxu0 0.0
  %367 = vmatprep.subr.mxu0 0.0
  %368 = vmatpush2.msra.mxu0 0.0
  %369 = vmatprep.subr.mxu0 0.0
  %370 = vmatpush2.msra.mxu0 0.0
  %371 = vmatprep.subr.mxu0 0.0
  %372 = vmatpush2.msra.mxu0 0.0
  %373 = vmatprep.subr.mxu0 0.0
  %374 = vmatpush2.msra.mxu0 0.0
  %375 = vmatprep.subr.mxu0 0.0
  %376 = vmatpush2.msra.mxu0 0.0
  %377 = vmatprep.subr.mxu0 0.0
  %378 = vmatpush2.msra.mxu0 0.0
  %379 = vmatprep.subr.mxu0 0.0
  %380 = vmatpush2.msra.mxu0 0.0
  %381 = vmatprep.subr.mxu0 0.0
  %382 = vmatpush2.msra.mxu0 0.0
  %383 = vmatprep.subr.mxu0 0.0
  %384 = vmatpush2.msra.mxu0 0.0
  %385 = vmatprep.subr.mxu0 0.0
  %386 = vmatpush2.msra.mxu0 0.0
  %387 = vmatprep.subr.mxu0 0.0
  %388 = vmatpush2.msra.mxu0 0.0
  %389 = vmatprep.subr.mxu0 0.0
  %390 = vmatpush2.msra.mxu0 0.0
  %391 = vmatprep.subr.mxu0 0.0
  %392 = vmatpush2.msra.mxu0 0.0
  %393 = vmatprep.mubr.f32.mxu0 0.0
  %394 = vmatmul.mubr.f32.gmra.mxu0 %v327
  %v395 = vpop.f32.mrf.mxu0
  %v396 = vadd.f32 0.0, %v395
  %v397 = vpop.f32.mrf.mxu0
  %398 = vdwg.mxu0
  %v399 = vmul.f32 %v396, 0.5
  %v400 = vld [vmem:[%s0] sm:$0xff]
  %v401 = vadd.f32 %v399, %v400
  %vm402 = vcmask 7168
  %403 = vst.msk [vmem:[%s2] sm:$0xff] %vm402, %v401
  // Predicated region
  $region10: #{tpu_custom_call.1} parent=0 // pred_check
    _
  $region11: #{tpu_custom_call.1} parent=0 // pred_check_branch
    %405 = sbr.rel (0) target = $region13
  $region12: #{tpu_custom_call.1} parent=0 // pred_region
    _
  $region13: #{tpu_custom_call.1} parent=0 // pred_fallthru
    _
  // Predicated region
  $region14: #{tpu_custom_call.1} parent=0 // pred_check
    _
  $region15: #{tpu_custom_call.1} parent=0 // pred_check_branch
    %407 = sbr.rel (0) target = $region17
  $region16: #{tpu_custom_call.1} parent=0 // pred_region
    _
  $region17: #{tpu_custom_call.1} parent=0 // pred_fallthru
    _

</llo_original>
